<compile_context>
chip_gen: v7x
topology: tpu7x:2x2x1
jax: 0.10.0
libtpu: 0.0.40
codegen_flags: <defaults>
</compile_context>

<pallas_src>
import jax
import jax.numpy as jnp
from jax.experimental import pallas as pl
from jax.experimental.pallas import tpu as pltpu


def _round_up(x, m):
    return ((x + m - 1) // m) * m


def _ffn_kernel(x_ref, w1_ref, w3_ref, w2_ref, o_ref, acc_ref):
    # x_ref:  (tm, dim)     resident input row tile (invariant along hidden axis)
    # w1_ref: (dim, tn)     streamed hidden-column tile of W1
    # w3_ref: (dim, tn)     streamed hidden-column tile of W3
    # w2_ref: (tn, dim)     streamed hidden-row tile of W2
    # o_ref:  (tm, dim)     output row tile (written on the last hidden step)
    # acc_ref:(tm, dim) f32 accumulator scratch
    n = pl.program_id(1)

    @pl.when(n == 0)
    def _():
        acc_ref[...] = jnp.zeros_like(acc_ref)

    x = x_ref[...]
    h1 = jnp.dot(x, w1_ref[...], preferred_element_type=jnp.float32)
    h3 = jnp.dot(x, w3_ref[...], preferred_element_type=jnp.float32)
    # SwiGLU gate in f32: the sigmoid goes to the EUP slot and the muls to the
    # VPU, both hidden under MXU time; single downcast before the w2 matmul.
    h = (h1 * jax.nn.sigmoid(h1)) * h3
    acc_ref[...] += jnp.dot(h.astype(w2_ref.dtype), w2_ref[...],
                            preferred_element_type=jnp.float32)

    @pl.when(n == pl.num_programs(1) - 1)
    def _():
        o_ref[...] = acc_ref[...].astype(o_ref.dtype)


def feed_forward(x, w1, w3, w2, *, tm=256, tn=512,
                 compute_dtype=jnp.bfloat16):
    """SwiGLU FFN: w2(silu(w1(x)) * w3(x)).  Dropout = identity (eval mode).

    x:  [B, S, dim]; w1/w3: [dim, hidden]; w2: [hidden, dim].
    Default tm/tn keep bf16 tiles (double-buffered) + the f32 accumulator
    under ~40 MiB VMEM at llama-7B dims (dim=4096, hidden=11008), so they fit
    v7x's 64 MiB VMEM; larger tn can be used on v5e/v6e (128 MiB VMEM).
    """
    B, S, dim = x.shape
    hidden = w1.shape[1]
    out_dtype = x.dtype
    M = B * S

    # Effective tile sizes: respect the (8, 128) tiling rule without
    # over-padding small shapes.
    tm_eff = min(tm, _round_up(M, 8))
    tn_eff = min(tn, _round_up(hidden, 128))
    Mp = _round_up(M, tm_eff)
    Hp = _round_up(hidden, tn_eff)

    x2d = x.reshape(M, dim).astype(compute_dtype)
    w1c = w1.astype(compute_dtype)
    w3c = w3.astype(compute_dtype)
    w2c = w2.astype(compute_dtype)

    if Mp != M:
        x2d = jnp.pad(x2d, ((0, Mp - M), (0, 0)))
    if Hp != hidden:
        # Zero-padded hidden columns/rows contribute exactly zero to the output.
        w1c = jnp.pad(w1c, ((0, 0), (0, Hp - hidden)))
        w3c = jnp.pad(w3c, ((0, 0), (0, Hp - hidden)))
        w2c = jnp.pad(w2c, ((0, Hp - hidden), (0, 0)))

    grid = (Mp // tm_eff, Hp // tn_eff)

    itemsize = jnp.dtype(compute_dtype).itemsize
    cost = pl.CostEstimate(
        flops=6 * M * dim * hidden,
        transcendentals=M * hidden,
        bytes_accessed=(3 * dim * hidden + M * dim) * itemsize
        + M * dim * jnp.dtype(out_dtype).itemsize,
    )

    out2d = pl.pallas_call(
        _ffn_kernel,
        out_shape=jax.ShapeDtypeStruct((Mp, dim), out_dtype),
        grid_spec=pltpu.PrefetchScalarGridSpec(
            num_scalar_prefetch=0,
            grid=grid,
            in_specs=[
                pl.BlockSpec((tm_eff, dim), lambda i, n: (i, 0)),   # x row tile
                pl.BlockSpec((dim, tn_eff), lambda i, n: (0, n)),   # w1 tile
                pl.BlockSpec((dim, tn_eff), lambda i, n: (0, n)),   # w3 tile
                pl.BlockSpec((tn_eff, dim), lambda i, n: (n, 0)),   # w2 tile
            ],
            out_specs=pl.BlockSpec((tm_eff, dim), lambda i, n: (i, 0)),
            scratch_shapes=[pltpu.VMEM((tm_eff, dim), jnp.float32)],
        ),
        compiler_params=pltpu.CompilerParams(
            dimension_semantics=("parallel", "arbitrary"),
            vmem_limit_bytes=64 * 1024 * 1024,
        ),
        cost_estimate=cost,
    )(x2d, w1c, w3c, w2c)

    return out2d[:M].reshape(B, S, dim)


def _make_params(key, dim, multiple_of):
    # hidden_dim derivation exactly as in the PyTorch __init__ (hidden_dim=None)
    hidden_dim = 4 * dim
    hidden_dim = int(2 * hidden_dim / 3)
    hidden_dim = multiple_of * ((hidden_dim + multiple_of - 1) // multiple_of)
    k1, k2, k3 = jax.random.split(key, 3)
    scale = 0.02
    # stored already transposed relative to nn.Linear weight layout
    w1 = (scale * jax.random.normal(k1, (dim, hidden_dim))).astype(jnp.float32)
    w3 = (scale * jax.random.normal(k2, (dim, hidden_dim))).astype(jnp.float32)
    w2 = (scale * jax.random.normal(k3, (hidden_dim, dim))).astype(jnp.float32)
    return w1, w3, w2, hidden_dim


if __name__ == "__main__":
    key = jax.random.PRNGKey(0)
    B, S, dim, multiple_of = 2, 8, 32, 32

    kx, kp = jax.random.split(key)
    x = jax.random.normal(kx, (B, S, dim), dtype=jnp.float32)
    w1, w3, w2, hidden_dim = _make_params(kp, dim, multiple_of)

    out = feed_forward(x, w1, w3, w2)
    out = jax.block_until_ready(out)

    # pure-JAX f32 reference check (dropout is identity in eval mode);
    # tolerance accounts for bf16 matmul inputs in the kernel.
    h = jax.nn.silu(x @ w1) * (x @ w3)
    ref = h @ w2
    assert out.shape == (B, S, dim)
    assert jnp.allclose(out, ref, atol=2e-2, rtol=2e-2)

    print("KERNEL_OK")
</pallas_src>

<mosaic_0001>
module attributes {stable_mosaic.version = 11 : i64} {
  func.func @_ffn_kernel(%arg0: i32, %arg1: i32, %arg2: memref<16x32xbf16, #tpu.memory_space<vmem>>, %arg3: memref<32x128xbf16, #tpu.memory_space<vmem>>, %arg4: memref<32x128xbf16, #tpu.memory_space<vmem>>, %arg5: memref<128x32xbf16, #tpu.memory_space<vmem>>, %arg6: memref<16x32xf32, #tpu.memory_space<vmem>>, %arg7: memref<16x32xf32, #tpu.memory_space<vmem>>) attributes {dimension_semantics = [#tpu.dimension_semantics<parallel>, #tpu.dimension_semantics<arbitrary>], iteration_bounds = array<i64: 1, 1>, scalar_prefetch = 0 : i64, scratch_operands = 1 : i64, tpu.core_type = #tpu.core_type<tc>, window_params = [{transform_indices = @transform_0, window_bounds = array<i64: 16, 32>}, {transform_indices = @transform_1, window_bounds = array<i64: 32, 128>}, {transform_indices = @transform_2, window_bounds = array<i64: 32, 128>}, {transform_indices = @transform_3, window_bounds = array<i64: 128, 32>}, {transform_indices = @transform_4, window_bounds = array<i64: 16, 32>}]} {
    %c0_i32 = arith.constant 0 : i32
    %0 = arith.cmpi eq, %arg1, %c0_i32 : i32
    %1 = arith.extui %0 : i1 to i32
    %c0_i32_0 = arith.constant 0 : i32
    %2 = arith.cmpi ne, %1, %c0_i32_0 : i32
    scf.if %2 {
      %cst_17 = arith.constant 0.000000e+00 : f32
      %24 = vector.broadcast %cst_17 : f32 to vector<16x32xf32>
      %c0_18 = arith.constant 0 : index
      %c0_19 = arith.constant 0 : index
      %25 = vector.load %arg7[%c0_18, %c0_19] : memref<16x32xf32, #tpu.memory_space<vmem>>, vector<16x32xf32>
      tpu.vector_store %arg7[%c0_18, %c0_19], %24 {strides = array<i32>} : memref<16x32xf32, #tpu.memory_space<vmem>>, vector<16x32xf32>,
    } else {
    }
    %c0 = arith.constant 0 : index
    %c0_1 = arith.constant 0 : index
    %3 = vector.load %arg2[%c0, %c0_1] : memref<16x32xbf16, #tpu.memory_space<vmem>>, vector<16x32xbf16>
    %c0_2 = arith.constant 0 : index
    %c0_3 = arith.constant 0 : index
    %4 = vector.load %arg3[%c0_2, %c0_3] : memref<32x128xbf16, #tpu.memory_space<vmem>>, vector<32x128xbf16>
    %cst = arith.constant dense<0.000000e+00> : vector<16x128xf32>
    %5 = tpu.matmul %3, %4, %cst {dimension_numbers = #tpu.dot_dimension_numbers<[1], [0], [0], [1], [0, 0, 1, 1], [], []>} : vector<16x32xbf16>, vector<32x128xbf16>, vector<16x128xf32> -> vector<16x128xf32>
    %c0_4 = arith.constant 0 : index
    %c0_5 = arith.constant 0 : index
    %6 = vector.load %arg4[%c0_4, %c0_5] : memref<32x128xbf16, #tpu.memory_space<vmem>>, vector<32x128xbf16>
    %cst_6 = arith.constant dense<0.000000e+00> : vector<16x128xf32>
    %7 = tpu.matmul %3, %6, %cst_6 {dimension_numbers = #tpu.dot_dimension_numbers<[1], [0], [0], [1], [0, 0, 1, 1], [], []>} : vector<16x32xbf16>, vector<32x128xbf16>, vector<16x128xf32> -> vector<16x128xf32>
    %8 = arith.negf %5 : vector<16x128xf32>
    %9 = math.exp %8 : vector<16x128xf32>
    %cst_7 = arith.constant 1.000000e+00 : f32
    %10 = vector.broadcast %cst_7 : f32 to vector<16x128xf32>
    %11 = arith.addf %10, %9 : vector<16x128xf32>
    %12 = arith.divf %10, %11 : vector<16x128xf32>
    %13 = arith.mulf %5, %12 : vector<16x128xf32>
    %14 = arith.mulf %13, %7 : vector<16x128xf32>
    %c0_8 = arith.constant 0 : index
    %c0_9 = arith.constant 0 : index
    %15 = vector.load %arg7[%c0_8, %c0_9] : memref<16x32xf32, #tpu.memory_space<vmem>>, vector<16x32xf32>
    %16 = arith.truncf %14 : vector<16x128xf32> to vector<16x128xbf16>
    %c0_10 = arith.constant 0 : index
    %c0_11 = arith.constant 0 : index
    %17 = vector.load %arg5[%c0_10, %c0_11] : memref<128x32xbf16, #tpu.memory_space<vmem>>, vector<128x32xbf16>
    %cst_12 = arith.constant dense<0.000000e+00> : vector<16x32xf32>
    %18 = tpu.matmul %16, %17, %cst_12 {dimension_numbers = #tpu.dot_dimension_numbers<[1], [0], [0], [1], [0, 0, 1, 1], [], []>} : vector<16x128xbf16>, vector<128x32xbf16>, vector<16x32xf32> -> vector<16x32xf32>
    %19 = arith.addf %15, %18 : vector<16x32xf32>
    %c0_13 = arith.constant 0 : index
    %c0_14 = arith.constant 0 : index
    %20 = vector.load %arg7[%c0_13, %c0_14] : memref<16x32xf32, #tpu.memory_space<vmem>>, vector<16x32xf32>
    tpu.vector_store %arg7[%c0_13, %c0_14], %19 {strides = array<i32>} : memref<16x32xf32, #tpu.memory_space<vmem>>, vector<16x32xf32>,
    %c0_i32_15 = arith.constant 0 : i32
    %21 = arith.cmpi eq, %arg1, %c0_i32_15 : i32
    %22 = arith.extui %21 : i1 to i32
    %c0_i32_16 = arith.constant 0 : i32
    %23 = arith.cmpi ne, %22, %c0_i32_16 : i32
    scf.if %23 {
      %c0_17 = arith.constant 0 : index
      %c0_18 = arith.constant 0 : index
      %24 = vector.load %arg7[%c0_17, %c0_18] : memref<16x32xf32, #tpu.memory_space<vmem>>, vector<16x32xf32>
      %c0_19 = arith.constant 0 : index
      %c0_20 = arith.constant 0 : index
      %25 = vector.load %arg6[%c0_19, %c0_20] : memref<16x32xf32, #tpu.memory_space<vmem>>, vector<16x32xf32>
      tpu.vector_store %arg6[%c0_19, %c0_20], %24 {strides = array<i32>} : memref<16x32xf32, #tpu.memory_space<vmem>>, vector<16x32xf32>,
    } else {
    }
    return
  }
  func.func @transform_0(%arg0: i32, %arg1: i32) -> (i32, i32) {
    %c0_i32 = arith.constant 0 : i32
    %c0_i32_0 = arith.constant 0 : i32
    return %arg0, %c0_i32 : i32, i32
  }
  func.func @transform_1(%arg0: i32, %arg1: i32) -> (i32, i32) {
    %c0_i32 = arith.constant 0 : i32
    %c0_i32_0 = arith.constant 0 : i32
    return %c0_i32, %arg1 : i32, i32
  }
  func.func @transform_2(%arg0: i32, %arg1: i32) -> (i32, i32) {
    %c0_i32 = arith.constant 0 : i32
    %c0_i32_0 = arith.constant 0 : i32
    return %c0_i32, %arg1 : i32, i32
  }
  func.func @transform_3(%arg0: i32, %arg1: i32) -> (i32, i32) {
    %c0_i32 = arith.constant 0 : i32
    %c0_i32_0 = arith.constant 0 : i32
    return %arg1, %c0_i32 : i32, i32
  }
  func.func @transform_4(%arg0: i32, %arg1: i32) -> (i32, i32) {
    %c0_i32 = arith.constant 0 : i32
    %c0_i32_0 = arith.constant 0 : i32
    return %arg0, %c0_i32 : i32, i32
  }
}

</mosaic_0001>

<llo_original>
// kernel: tpu_custom_call.1
$region0: #{tpu_custom_call.1}
  #allocation0 [shape = 'u32[]', space=smem, size = 0x4, offset = 0x4, fixed_abs, tag = 'smem constant byte address 0x4 - core index']
  #allocation1 [shape = 'u32[144,128]{1,0:T(1,128)}', space=vmem, size = 0x12000, scoped, tag = 'internal scratch']
  #allocation2 [shape = 'f32[16,32]{1,0:T(8,128)}', space=vmem, size = 0x2000, scoped, tag = 'scratch operand']
  %s0 = inlined_call_operand.hbm [shape: bf16[16,32], index: 0, kind: input, shape index: {}]
  %s1 = inlined_call_operand.hbm [shape: bf16[32,128], index: 1, kind: input, shape index: {}]
  %s2 = inlined_call_operand.hbm [shape: bf16[32,128], index: 2, kind: input, shape index: {}]
  %s3 = inlined_call_operand.hbm [shape: bf16[128,32], index: 3, kind: input, shape index: {}]
  %s4 = inlined_call_operand.hbm [shape: f32[16,32], index: 4, kind: output, shape index: {}]
  %s5 = sld [smem:[#allocation0]]
  $region50: #{tpu_custom_call.1} parent=0
    _
  %s7 = ssub.s32 1, %s5
  %s8 = scalar_select 0, %s7, %s5
  $region1: #{tpu_custom_call.1} parent=0
    #allocation3 [shape = 'u8[4096]{0}', space=vmem, size = 0x1000, scoped, tag = 'input window, operand 0, single buffered']
    #allocation4 [shape = 's32[1]{0}', space=sflag, size = 0x4, scoped, tag = 'scoped memory for tpu_custom_call.1']
    #allocation5 [shape = 's32[1]{0}', space=sflag, size = 0x4, scoped, tag = 'scoped memory for tpu_custom_call.1']
    #allocation6 [shape = 'u8[8192]{0}', space=vmem, size = 0x2000, scoped, tag = 'input window, operand 1, single buffered']
    #allocation7 [shape = 's32[1]{0}', space=sflag, size = 0x4, scoped, tag = 'scoped memory for tpu_custom_call.1']
    #allocation8 [shape = 'u8[8192]{0}', space=vmem, size = 0x2000, scoped, tag = 'input window, operand 2, single buffered']
    #allocation9 [shape = 'u8[32768]{0}', space=vmem, size = 0x8000, scoped, tag = 'input window, operand 3, single buffered']
    #allocation10 [shape = 's32[1]{0}', space=sflag, size = 0x4, scoped, tag = 'scoped memory for tpu_custom_call.1']
    #allocation11 [shape = 'u8[8192]{0}', space=vmem, size = 0x2000, scoped, tag = 'output window, operand 0, single buffered']
    %9 = vsyncpa [#allocation4], 0
    %10 = vsyncpa [#allocation7], 0
    %11 = vsyncpa [#allocation10], 0
    %12 = vsyncpa [#allocation5], 0
    // Predicated region
    $region2: #{tpu_custom_call.1} parent=1 // pred_check
      _
    $region3: #{tpu_custom_call.1} parent=1 // pred_check_branch
      %14 = sbr.rel (0) target = $region5
    $region4: #{tpu_custom_call.1} parent=1 // pred_region
      %s16 = ssub.s32 128, 128
      %17 = vsyncadd [#allocation4], %s16
      %s18 = sshll.u32 [#allocation3], 4
      %s19 = int_to_ptr.vmem [resolvable:$true] %s18
      %24 = dma.hbm_to_vmem [thread:$0]  %s0, 128, %s19, [#allocation4], 64, 64, 4
    $region5: #{tpu_custom_call.1} parent=1 // pred_fallthru
      _
    // Predicated region
    $region6: #{tpu_custom_call.1} parent=1 // pred_check
      _
    $region7: #{tpu_custom_call.1} parent=1 // pred_check_branch
      %26 = sbr.rel (0) target = $region9
    $region8: #{tpu_custom_call.1} parent=1 // pred_region
      %s28 = ssub.s32 256, 256
      %29 = vsyncadd [#allocation7], %s28
      %s30 = sshll.u32 [#allocation6], 4
      %s31 = int_to_ptr.vmem [resolvable:$true] %s30
      %36 = dma.hbm_to_vmem [thread:$0]  %s1, 256, %s31, [#allocation7], 64, 64, 4
    $region9: #{tpu_custom_call.1} parent=1 // pred_fallthru
      _
    // Predicated region
    $region10: #{tpu_custom_call.1} parent=1 // pred_check
      _
    $region11: #{tpu_custom_call.1} parent=1 // pred_check_branch
      %38 = sbr.rel (0) target = $region13
    $region12: #{tpu_custom_call.1} parent=1 // pred_region
      %s40 = ssub.s32 256, 256
      %41 = vsyncadd [#allocation7], %s40
      %s42 = sshll.u32 [#allocation8], 4
      %s43 = int_to_ptr.vmem [resolvable:$true] %s42
      %48 = dma.hbm_to_vmem [thread:$0]  %s2, 256, %s43, [#allocation7], 64, 64, 4
    $region13: #{tpu_custom_call.1} parent=1 // pred_fallthru
      _
    // Predicated region
    $region14: #{tpu_custom_call.1} parent=1 // pred_check
      _
    $region15: #{tpu_custom_call.1} parent=1 // pred_check_branch
      %50 = sbr.rel (0) target = $region17
    $region16: #{tpu_custom_call.1} parent=1 // pred_region
      %s52 = ssub.s32 1024, 1024
      %53 = vsyncadd [#allocation10], %s52
      %s54 = sshll.u32 [#allocation9], 4
      %s55 = int_to_ptr.vmem [resolvable:$true] %s54
      %60 = dma.hbm_to_vmem [thread:$0]  %s3, 1024, %s55, [#allocation10], 64, 64, 4
    $region17: #{tpu_custom_call.1} parent=1 // pred_fallthru
      _
    // Predicated region
    $region18: #{tpu_custom_call.1} parent=1 // pred_check
      _
    $region19: #{tpu_custom_call.1} parent=1 // pred_check_branch
      %62 = sbr.rel (0) target = $region21
    $region20: #{tpu_custom_call.1} parent=1 // pred_region
      %63 = dma.done [#allocation4], 128
    $region21: #{tpu_custom_call.1} parent=1 // pred_fallthru
      _
    // Predicated region
    $region22: #{tpu_custom_call.1} parent=1 // pred_check
      _
    $region23: #{tpu_custom_call.1} parent=1 // pred_check_branch
      %65 = sbr.rel (0) target = $region25
    $region24: #{tpu_custom_call.1} parent=1 // pred_region
      %66 = dma.done [#allocation7], 256
    $region25: #{tpu_custom_call.1} parent=1 // pred_fallthru
      _
    // Predicated region
    $region26: #{tpu_custom_call.1} parent=1 // pred_check
      _
    $region27: #{tpu_custom_call.1} parent=1 // pred_check_branch
      %68 = sbr.rel (0) target = $region29
    $region28: #{tpu_custom_call.1} parent=1 // pred_region
      %69 = dma.done [#allocation7], 256
    $region29: #{tpu_custom_call.1} parent=1 // pred_fallthru
      _
    // Predicated region
    $region30: #{tpu_custom_call.1} parent=1 // pred_check
      _
    $region31: #{tpu_custom_call.1} parent=1 // pred_check_branch
      %71 = sbr.rel (0) target = $region33
    $region32: #{tpu_custom_call.1} parent=1 // pred_region
      %72 = dma.done [#allocation10], 1024
    $region33: #{tpu_custom_call.1} parent=1 // pred_fallthru
      _
    %p74 = scmp.eq.s32.totalorder 0, 0
    // Predicated region
    $region34: #{tpu_custom_call.1} parent=1 // pred_check
      %p75 = pneg %p74
    $region35: #{tpu_custom_call.1} parent=1 // pred_check_branch
      %77 = sbr.rel (%p75) target = $region37
    $region36: #{tpu_custom_call.1} parent=1 // pred_region
      %vm78 = vcmask 261120
      %79 = vst.msk [vmem:[#allocation2] sm:$0xff] %vm78, 0.0
      %80 = vst.msk [vmem:[#allocation2 + $0x8] sm:$0xff] %vm78, 0.0
    $region37: #{tpu_custom_call.1} parent=1 // pred_fallthru
      _
    %v81 = vld [vmem:[#allocation3] sm:$0xf]
    %v82 = vld [vmem:[#allocation3 + $0x4] sm:$0xf]
    %v83 = vld [vmem:[#allocation6] sm:$0xf]
    %v84 = vld [vmem:[#allocation6 + $0x4] sm:$0xf]
    %v85 = vld [vmem:[#allocation6 + $0x8] sm:$0xf]
    %v86 = vld [vmem:[#allocation6 + $0xc] sm:$0xf]
    %v89 = vunpack.c.l.b16 %v81
    %v90 = vunpack.c.l.b16 %v82
    %v91 = vpack.c.b16 %v90, %v89
    %v96 = vunpack.c.l.b16 %v83
    %v97 = vunpack.c.l.b16 %v84
    %v98 = vunpack.c.l.b16 %v85
    %v99 = vunpack.c.l.b16 %v86
    %v100 = vpack.c.b16 %v97, %v96
    %v101 = vpack.c.b16 %v99, %v98
    %vm104 = vcmask 261120
    %v106 = vsel %vm104, %v91, 0
    %108 = vmatprep.subr.bf16.mxu0 0
    %109 = vmatpush1.bf16.msra.mxu0 %v100
    %110 = vmatprep.subr.bf16.mxu0 0
    %111 = vmatpush1.bf16.msra.mxu0 %v101
    %112 = vmatprep.subr.bf16.mxu0 0
    %113 = vmatpush1.bf16.msra.mxu0 0
    %114 = vmatprep.subr.bf16.mxu0 0
    %115 = vmatpush1.bf16.msra.mxu0 0
    %116 = vmatprep.subr.bf16.mxu0 0
    %117 = vmatpush1.bf16.msra.mxu0 0
    %118 = vmatprep.subr.bf16.mxu0 0
    %119 = vmatpush1.bf16.msra.mxu0 0
    %120 = vmatprep.subr.bf16.mxu0 0
    %121 = vmatpush1.bf16.msra.mxu0 0
    %122 = vmatprep.subr.bf16.mxu0 0
    %123 = vmatpush1.bf16.msra.mxu0 0
    %124 = vmatprep.subr.bf16.mxu0 0
    %125 = vmatpush1.bf16.msra.mxu0 0
    %126 = vmatprep.subr.bf16.mxu0 0
    %127 = vmatpush1.bf16.msra.mxu0 0
    %128 = vmatprep.subr.bf16.mxu0 0
    %129 = vmatpush1.bf16.msra.mxu0 0
    %130 = vmatprep.subr.bf16.mxu0 0
    %131 = vmatpush1.bf16.msra.mxu0 0
    %132 = vmatprep.subr.bf16.mxu0 0
    %133 = vmatpush1.bf16.msra.mxu0 0
    %134 = vmatprep.subr.bf16.mxu0 0
    %135 = vmatpush1.bf16.msra.mxu0 0
    %136 = vmatprep.subr.bf16.mxu0 0
    %137 = vmatpush1.bf16.msra.mxu0 0
    %138 = vmatprep.subr.bf16.mxu0 0
    %139 = vmatpush1.bf16.msra.mxu0 0
    %140 = vmatprep.mubr.bf16.mxu0 0
    %141 = vmatmul.mubr.bf16.gmra.mrb[0].mxu0 %v106
    %v142 = vpop.f32.mrb[0].mxu0
    %v143 = vadd.f32 0.0, %v142
    %v144 = vpop.f32.mrb[0].mxu0
    %v145 = vpop.f32.mrb[0].mxu0
    %v146 = vadd.f32 0.0, %v145
    %v147 = vpop.f32.mrb[0].mxu0
    %148 = vdwg.mxu0
    %v149 = vld [vmem:[#allocation8] sm:$0xf]
    %v150 = vld [vmem:[#allocation8 + $0x4] sm:$0xf]
    %v151 = vld [vmem:[#allocation8 + $0x8] sm:$0xf]
    %v152 = vld [vmem:[#allocation8 + $0xc] sm:$0xf]
    %v157 = vunpack.c.l.b16 %v149
    %v158 = vunpack.c.l.b16 %v150
    %v159 = vunpack.c.l.b16 %v151
    %v160 = vunpack.c.l.b16 %v152
    %v161 = vpack.c.b16 %v158, %v157
    %v162 = vpack.c.b16 %v160, %v159
    %165 = vmatprep.subr.bf16.mxu0 0
    %166 = vmatpush1.bf16.msra.mxu0 %v161
    %167 = vmatprep.subr.bf16.mxu0 0
    %168 = vmatpush1.bf16.msra.mxu0 %v162
    %169 = vmatprep.subr.bf16.mxu0 0
    %170 = vmatpush1.bf16.msra.mxu0 0
    %171 = vmatprep.subr.bf16.mxu0 0
    %172 = vmatpush1.bf16.msra.mxu0 0
    %173 = vmatprep.subr.bf16.mxu0 0
    %174 = vmatpush1.bf16.msra.mxu0 0
    %175 = vmatprep.subr.bf16.mxu0 0
    %176 = vmatpush1.bf16.msra.mxu0 0
    %177 = vmatprep.subr.bf16.mxu0 0
    %178 = vmatpush1.bf16.msra.mxu0 0
    %179 = vmatprep.subr.bf16.mxu0 0
    %180 = vmatpush1.bf16.msra.mxu0 0
    %181 = vmatprep.subr.bf16.mxu0 0
    %182 = vmatpush1.bf16.msra.mxu0 0
    %183 = vmatprep.subr.bf16.mxu0 0
    %184 = vmatpush1.bf16.msra.mxu0 0
    %185 = vmatprep.subr.bf16.mxu0 0
    %186 = vmatpush1.bf16.msra.mxu0 0
    %187 = vmatprep.subr.bf16.mxu0 0
    %188 = vmatpush1.bf16.msra.mxu0 0
    %189 = vmatprep.subr.bf16.mxu0 0
    %190 = vmatpush1.bf16.msra.mxu0 0
    %191 = vmatprep.subr.bf16.mxu0 0
    %192 = vmatpush1.bf16.msra.mxu0 0
    %193 = vmatprep.subr.bf16.mxu0 0
    %194 = vmatpush1.bf16.msra.mxu0 0
    %195 = vmatprep.subr.bf16.mxu0 0
    %196 = vmatpush1.bf16.msra.mxu0 0
    %197 = vmatprep.mubr.bf16.mxu0 0
    %198 = vmatmul.mubr.bf16.gmra.mrb[0].mxu0 %v106
    %v199 = vpop.f32.mrb[0].mxu0
    %v200 = vadd.f32 0.0, %v199
    %v201 = vpop.f32.mrb[0].mxu0
    %v202 = vpop.f32.mrb[0].mxu0
    %v203 = vadd.f32 0.0, %v202
    %v204 = vpop.f32.mrb[0].mxu0
    %205 = vdwg.mxu0
    %v206 = vxor.u32 %v143, 2147483648
    %v207 = vxor.u32 %v146, 2147483648
    %v208 = vmul.f32 %v206, 1.442695
    %v209 = vpow.pop %v208
    %v210 = vmul.f32 %v207, 1.442695
    %v211 = vpow.pop %v210
    %v212 = vadd.f32 %v209, 1.0
    %v213 = vadd.f32 %v211, 1.0
    %v214 = vrcp.pop %v212
    %v215 = vmul.f32 1.0, %v214
    %v216 = vrcp.pop %v213
    %v217 = vmul.f32 1.0, %v216
    %v218 = vmul.f32 %v143, %v215
    %v219 = vmul.f32 %v146, %v217
    %v220 = vmul.f32 %v218, %v200
    %v221 = vmul.f32 %v219, %v203
    %v222 = vld [vmem:[#allocation2] sm:$0xff]
    %v223 = vld [vmem:[#allocation2 + $0x8] sm:$0xff]
    %v224 = vpack.c.bf16 %v221, %v220
    %v225 = vld [vmem:[#allocation9] sm:$0xf]
    %v226 = vld [vmem:[#allocation9 + $0x4] sm:$0xf]
    %v227 = vld [vmem:[#allocation9 + $0x8] sm:$0xf]
    %v228 = vld [vmem:[#allocation9 + $0xc] sm:$0xf]
    %v229 = vld [vmem:[#allocation9 + $0x10] sm:$0xf]
    %v230 = vld [vmem:[#allocation9 + $0x14] sm:$0xf]
    %v231 = vld [vmem:[#allocation9 + $0x18] sm:$0xf]
    %v232 = vld [vmem:[#allocation9 + $0x1c] sm:$0xf]
    %v233 = vld [vmem:[#allocation9 + $0x20] sm:$0xf]
    %v234 = vld [vmem:[#allocation9 + $0x24] sm:$0xf]
    %v235 = vld [vmem:[#allocation9 + $0x28] sm:$0xf]
    %v236 = vld [vmem:[#allocation9 + $0x2c] sm:$0xf]
    %v237 = vld [vmem:[#allocation9 + $0x30] sm:$0xf]
    %v238 = vld [vmem:[#allocation9 + $0x34] sm:$0xf]
    %v239 = vld [vmem:[#allocation9 + $0x38] sm:$0xf]
    %v240 = vld [vmem:[#allocation9 + $0x3c] sm:$0xf]
    %v257 = vunpack.c.l.b16 %v225
    %v258 = vunpack.c.l.b16 %v226
    %v259 = vunpack.c.l.b16 %v227
    %v260 = vunpack.c.l.b16 %v228
    %v261 = vunpack.c.l.b16 %v229
    %v262 = vunpack.c.l.b16 %v230
    %v263 = vunpack.c.l.b16 %v231
    %v264 = vunpack.c.l.b16 %v232
    %v265 = vunpack.c.l.b16 %v233
    %v266 = vunpack.c.l.b16 %v234
    %v267 = vunpack.c.l.b16 %v235
    %v268 = vunpack.c.l.b16 %v236
    %v269 = vunpack.c.l.b16 %v237
    %v270 = vunpack.c.l.b16 %v238
    %v271 = vunpack.c.l.b16 %v239
    %v272 = vunpack.c.l.b16 %v240
    %v273 = vpack.c.b16 %v258, %v257
    %v274 = vpack.c.b16 %v260, %v259
    %v275 = vpack.c.b16 %v262, %v261
    %v276 = vpack.c.b16 %v264, %v263
    %v277 = vpack.c.b16 %v266, %v265
    %v278 = vpack.c.b16 %v268, %v267
    %v279 = vpack.c.b16 %v270, %v269
    %v280 = vpack.c.b16 %v272, %v271
    %289 = vmatprep.subr.bf16.mxu0 0
    %290 = vmatpush1.bf16.msra.mxu0 %v273
    %291 = vmatprep.subr.bf16.mxu0 0
    %292 = vmatpush1.bf16.msra.mxu0 %v274
    %293 = vmatprep.subr.bf16.mxu0 0
    %294 = vmatpush1.bf16.msra.mxu0 %v275
    %295 = vmatprep.subr.bf16.mxu0 0
    %296 = vmatpush1.bf16.msra.mxu0 %v276
    %297 = vmatprep.subr.bf16.mxu0 0
    %298 = vmatpush1.bf16.msra.mxu0 %v277
    %299 = vmatprep.subr.bf16.mxu0 0
    %300 = vmatpush1.bf16.msra.mxu0 %v278
    %301 = vmatprep.subr.bf16.mxu0 0
    %302 = vmatpush1.bf16.msra.mxu0 %v279
    %303 = vmatprep.subr.bf16.mxu0 0
    %304 = vmatpush1.bf16.msra.mxu0 %v280
    %305 = vmatprep.subr.bf16.mxu0 0
    %306 = vmatpush1.bf16.msra.mxu0 0
    %307 = vmatprep.subr.bf16.mxu0 0
    %308 = vmatpush1.bf16.msra.mxu0 0
    %309 = vmatprep.subr.bf16.mxu0 0
    %310 = vmatpush1.bf16.msra.mxu0 0
    %311 = vmatprep.subr.bf16.mxu0 0
    %312 = vmatpush1.bf16.msra.mxu0 0
    %313 = vmatprep.subr.bf16.mxu0 0
    %314 = vmatpush1.bf16.msra.mxu0 0
    %315 = vmatprep.subr.bf16.mxu0 0
    %316 = vmatpush1.bf16.msra.mxu0 0
    %317 = vmatprep.subr.bf16.mxu0 0
    %318 = vmatpush1.bf16.msra.mxu0 0
    %319 = vmatprep.subr.bf16.mxu0 0
    %320 = vmatpush1.bf16.msra.mxu0 0
    %321 = vmatprep.mubr.bf16.mxu0 0
    %322 = vmatmul.mubr.bf16.gmra.mrb[0].mxu0 %v224
    %v323 = vpop.f32.mrb[0].mxu0
    %v324 = vadd.f32 0.0, %v323
    %v325 = vpop.f32.mrb[0].mxu0
    %v326 = vpop.f32.mrb[0].mxu0
    %v327 = vadd.f32 0.0, %v326
    %v328 = vpop.f32.mrb[0].mxu0
    %329 = vdwg.mxu0
    %v330 = vadd.f32 %v222, %v324
    %v331 = vadd.f32 %v223, %v327
    %332 = vst.msk [vmem:[#allocation2] sm:$0xff] %vm104, %v330
    %333 = vst.msk [vmem:[#allocation2 + $0x8] sm:$0xff] %vm104, %v331
    // Predicated region
    $region38: #{tpu_custom_call.1} parent=1 // pred_check
      %p334 = pneg %p74
    $region39: #{tpu_custom_call.1} parent=1 // pred_check_branch
      %336 = sbr.rel (%p334) target = $region41
    $region40: #{tpu_custom_call.1} parent=1 // pred_region
      %v337 = vld [vmem:[#allocation2] sm:$0xff]
      %v338 = vld [vmem:[#allocation2 + $0x8] sm:$0xff]
      %339 = vst.msk [vmem:[#allocation11] sm:$0xff] %vm104, %v337
      %340 = vst.msk [vmem:[#allocation11 + $0x8] sm:$0xff] %vm104, %v338
    $region41: #{tpu_custom_call.1} parent=1 // pred_fallthru
      _
    // Predicated region
    $region42: #{tpu_custom_call.1} parent=1 // pred_check
      _
    $region43: #{tpu_custom_call.1} parent=1 // pred_check_branch
      %342 = sbr.rel (0) target = $region45
    $region44: #{tpu_custom_call.1} parent=1 // pred_region
      %s344 = ssub.s32 256, 256
      %345 = vsyncadd [#allocation5], %s344
      %s346 = sshll.u32 [#allocation11], 4
      %s347 = int_to_ptr.vmem [resolvable:$true] %s346
      %352 = dma.vmem_to_hbm [thread:$0]  %s347, 256, %s4, [#allocation5], 128, 128, 8
    $region45: #{tpu_custom_call.1} parent=1 // pred_fallthru
      _
    // Predicated region
    $region46: #{tpu_custom_call.1} parent=1 // pred_check
      _
    $region47: #{tpu_custom_call.1} parent=1 // pred_check_branch
      %354 = sbr.rel (0) target = $region49
    $region48: #{tpu_custom_call.1} parent=1 // pred_region
      %355 = dma.done [#allocation5], 256
    $region49: #{tpu_custom_call.1} parent=1 // pred_fallthru
      _
    %356 = vsyncpa [#allocation4], 1
    %357 = vsyncpa [#allocation7], 1
    %358 = vsyncpa [#allocation10], 1
    %359 = vsyncpa [#allocation5], 1

</llo_original>
